<compile_context>
chip_gen: v7x
topology: tpu7x:2x2x1
jax: 0.10.0
libtpu: 0.0.40
codegen_flags: <defaults>
</compile_context>

<pallas_src>
import functools

import jax
import jax.numpy as jnp
from jax.experimental import pallas as pl
from jax.experimental.pallas import tpu as pltpu


def _sylvester_kernel(z_ref, big_ref, p_ref, f_ref, ld_ref, *, Z, M):
    # Shapes (TB = batch tile on the lane axis):
    #   z_ref   : (Z, TB)
    #   big_ref : (M, Z + 2M, TB)   = [Q^T | R | R_tilde] packed on axis 1
    #   p_ref   : (3M, TB)          = [b ; diag(R) ; diag(R_tilde)]
    z = z_ref[...].astype(jnp.float32)                      # (Z, TB)
    big = big_ref[...].astype(jnp.float32)                  # (M, Z+2M, TB)
    q = big[:, 0:Z, :]                                      # (M, Z, TB)  q[m,z]=Q[z,m]
    r = big[:, Z:Z + M, :]                                  # (M, M, TB)
    rt = big[:, Z + M:Z + 2 * M, :]                         # (M, M, TB)
    p = p_ref[...].astype(jnp.float32)                      # (3M, TB)
    bv = p[0:M]                                             # (M, TB)
    rd = p[M:2 * M]                                         # (M, TB)  diag(R)
    rtd = p[2 * M:3 * M]                                    # (M, TB)  diag(R_tilde)

    # zq[m] = sum_z Q[z, m] * z[z]          (sublane reduce over Z, lane-dense)
    zq = jnp.sum(q * z[None, :, :], axis=1)                 # (M, TB)
    # prod[m] = sum_n R_tilde[m, n] * zq[n] + b[m]
    prod = jnp.sum(rt * zq[None, :, :], axis=1) + bv        # (M, TB)
    h = jnp.tanh(prod)                                      # (M, TB)  EUP

    # Reassociated chain: u = R h ; f = z + Q u.
    # u[n] = sum_m R[n, m] * h[m]
    u = jnp.sum(r * h[None, :, :], axis=1)                  # (M, TB)
    # f[z] = z[z] + sum_m Q[z, m] * u[m]    (leading-axis reduce: pure VALU adds)
    f = z + jnp.sum(q * u[:, None, :], axis=0)              # (Z, TB)
    f_ref[...] = f.astype(f_ref.dtype)

    h_der = 1.0 - h * h
    det_j_diag = 1.0 + h_der * rd * rtd                     # (M, TB)
    ld_ref[...] = jnp.sum(jnp.log(jnp.abs(det_j_diag)),
                          axis=0, keepdims=True)            # (1, TB)


@functools.partial(jax.jit, static_argnames=("block_b",))
def sylvester_forward(z, Q, R, R_tilde, b, *, block_b=1024):
    """z: (B, Z), Q: (B, Z, M), R/R_tilde: (B, M, M), b: (B, M)."""
    B, Z = z.shape
    M = R.shape[-1]

    # Hoist diagonal extraction (rides the packing pass below).
    r_diag = jnp.diagonal(R, axis1=1, axis2=2)               # (B, M)
    rt_diag = jnp.diagonal(R_tilde, axis1=1, axis2=2)        # (B, M)

    # Batch-on-lanes layout + input fusion (3 arrays instead of 7).
    zT = z.T                                                 # (Z, B)
    big = jnp.concatenate([
        jnp.transpose(Q, (2, 1, 0)),                         # (M, Z, B)  q[m,z,b]=Q[b,z,m]
        jnp.transpose(R, (1, 2, 0)),                         # (M, M, B)
        jnp.transpose(R_tilde, (1, 2, 0)),                   # (M, M, B)
    ], axis=1)                                               # (M, Z+2M, B)
    params = jnp.concatenate([b.T, r_diag.T, rt_diag.T], axis=0)  # (3M, B)

    if B <= block_b:
        # Small batch: single grid step, blocks equal full arrays -> no padding,
        # no (8,128) constraint, no per-step overhead beyond one launch.
        tb, nb, Bp = B, 1, B
    else:
        # Large batch: lane-multiple tile; pad batch (lanes) up to a multiple.
        tb = max(128, (block_b // 128) * 128)
        nb = pl.cdiv(B, tb)
        Bp = nb * tb
        if Bp != B:
            padw = Bp - B
            zT = jnp.pad(zT, ((0, 0), (0, padw)))
            big = jnp.pad(big, ((0, 0), (0, 0), (0, padw)))
            params = jnp.pad(params, ((0, 0), (0, padw)))

    kernel = functools.partial(_sylvester_kernel, Z=Z, M=M)

    f_t, ld_t = pl.pallas_call(
        kernel,
        out_shape=(
            jax.ShapeDtypeStruct((Z, Bp), z.dtype),
            jax.ShapeDtypeStruct((1, Bp), jnp.float32),
        ),
        grid_spec=pltpu.PrefetchScalarGridSpec(
            num_scalar_prefetch=0,
            grid=(nb,),
            in_specs=[
                pl.BlockSpec((Z, tb), lambda i: (0, i)),
                pl.BlockSpec((M, Z + 2 * M, tb), lambda i: (0, 0, i)),
                pl.BlockSpec((3 * M, tb), lambda i: (0, i)),
            ],
            out_specs=[
                pl.BlockSpec((Z, tb), lambda i: (0, i)),
                pl.BlockSpec((1, tb), lambda i: (0, i)),
            ],
        ),
        compiler_params=pltpu.CompilerParams(
            dimension_semantics=("parallel",)),
    )(zT, big, params)

    return f_t[:, :B].T, ld_t[0, :B]


def sylvester_ref(z, Q, R, R_tilde, b):
    """Pure-JAX reference matching the PyTorch module exactly."""
    zc = z[..., None]                                   # (B, Z, 1)
    bc = b[..., None]                                   # (B, M, 1)
    RQ = jnp.einsum("bij,bkj->bik", R_tilde, Q)         # R_tilde @ Q^T
    prod = jnp.einsum("bmz,bzo->bmo", RQ, zc) + bc      # (B, M, 1)
    QR = jnp.einsum("bzm,bmn->bzn", Q, R)               # (B, Z, M)
    h = jnp.tanh(prod)
    f_z = (zc + jnp.einsum("bzm,bmo->bzo", QR, h))[..., 0]
    R_diag = jnp.diagonal(R, axis1=1, axis2=2)
    Rt_diag = jnp.diagonal(R_tilde, axis1=1, axis2=2)
    h_der = (1.0 - h ** 2)[..., 0]
    det_j = 1.0 + h_der * R_diag * Rt_diag
    return f_z, jnp.sum(jnp.log(jnp.abs(det_j)), axis=-1)


if __name__ == "__main__":
    # Small shapes: batch=16, z_size=32, M=8.  B <= block_b -> single grid
    # step, no padding, all per-step overhead paid exactly once.
    B, Z, M = 16, 32, 8

    key = jax.random.PRNGKey(0)
    kz, kq, kr, krt, kb = jax.random.split(key, 5)
    z = jax.random.normal(kz, (B, Z), dtype=jnp.float32)
    Q = jax.random.normal(kq, (B, Z, M), dtype=jnp.float32) * 0.1
    R = jax.random.normal(kr, (B, M, M), dtype=jnp.float32) * 0.1
    R_tilde = jax.random.normal(krt, (B, M, M), dtype=jnp.float32) * 0.1
    b = jax.random.normal(kb, (B, M), dtype=jnp.float32) * 0.1

    f_z, log_det = sylvester_forward(z, Q, R, R_tilde, b)
    jax.block_until_ready((f_z, log_det))

    f_ref, ld_ref = sylvester_ref(z, Q, R, R_tilde, b)
    assert f_z.shape == (B, Z) and log_det.shape == (B,)
    assert jnp.allclose(f_z, f_ref, atol=1e-5, rtol=1e-5)
    assert jnp.allclose(log_det, ld_ref, atol=1e-5, rtol=1e-5)

    print("KERNEL_OK")
</pallas_src>

<mosaic_0001>
module attributes {stable_mosaic.version = 11 : i64} {
  func.func @_sylvester_kernel(%arg0: i32, %arg1: memref<32x16xf32, #tpu.memory_space<vmem>>, %arg2: memref<8x48x16xf32, #tpu.memory_space<vmem>>, %arg3: memref<24x16xf32, #tpu.memory_space<vmem>>, %arg4: memref<32x16xf32, #tpu.memory_space<vmem>>, %arg5: memref<1x16xf32, #tpu.memory_space<vmem>>) attributes {dimension_semantics = [#tpu.dimension_semantics<parallel>], iteration_bounds = array<i64: 1>, scalar_prefetch = 0 : i64, scratch_operands = 0 : i64, tpu.core_type = #tpu.core_type<tc>, window_params = [{transform_indices = @transform_0, window_bounds = array<i64: 32, 16>}, {transform_indices = @transform_1, window_bounds = array<i64: 8, 48, 16>}, {transform_indices = @transform_2, window_bounds = array<i64: 24, 16>}, {transform_indices = @transform_3, window_bounds = array<i64: 32, 16>}, {transform_indices = @transform_4, window_bounds = array<i64: 1, 16>}]} {
    %c0 = arith.constant 0 : index
    %c0_0 = arith.constant 0 : index
    %0 = vector.load %arg1[%c0, %c0_0] : memref<32x16xf32, #tpu.memory_space<vmem>>, vector<32x16xf32>
    %c0_1 = arith.constant 0 : index
    %c0_2 = arith.constant 0 : index
    %c0_3 = arith.constant 0 : index
    %1 = vector.load %arg2[%c0_1, %c0_2, %c0_3] : memref<8x48x16xf32, #tpu.memory_space<vmem>>, vector<8x48x16xf32>
    %2 = vector.extract_strided_slice %1 {offsets = [0, 0, 0], sizes = [8, 32, 16], strides = [1, 1, 1]} : vector<8x48x16xf32> to vector<8x32x16xf32>
    %3 = vector.extract_strided_slice %1 {offsets = [0, 32, 0], sizes = [8, 8, 16], strides = [1, 1, 1]} : vector<8x48x16xf32> to vector<8x8x16xf32>
    %4 = vector.extract_strided_slice %1 {offsets = [0, 40, 0], sizes = [8, 8, 16], strides = [1, 1, 1]} : vector<8x48x16xf32> to vector<8x8x16xf32>
    %c0_4 = arith.constant 0 : index
    %c0_5 = arith.constant 0 : index
    %5 = vector.load %arg3[%c0_4, %c0_5] : memref<24x16xf32, #tpu.memory_space<vmem>>, vector<24x16xf32>
    %6 = vector.extract_strided_slice %5 {offsets = [0, 0], sizes = [8, 16], strides = [1, 1]} : vector<24x16xf32> to vector<8x16xf32>
    %7 = vector.extract_strided_slice %5 {offsets = [8, 0], sizes = [8, 16], strides = [1, 1]} : vector<24x16xf32> to vector<8x16xf32>
    %8 = vector.extract_strided_slice %5 {offsets = [16, 0], sizes = [8, 16], strides = [1, 1]} : vector<24x16xf32> to vector<8x16xf32>
    %9 = vector.shape_cast %0 : vector<32x16xf32> to vector<1x32x16xf32>
    %10 = vector.broadcast %9 : vector<1x32x16xf32> to vector<8x32x16xf32>
    %11 = arith.mulf %2, %10 : vector<8x32x16xf32>
    %cst = arith.constant dense<0.000000e+00> : vector<8x16xf32>
    %12 = vector.multi_reduction <add>, %11, %cst [1] : vector<8x32x16xf32> to vector<8x16xf32>
    %13 = vector.shape_cast %12 : vector<8x16xf32> to vector<1x8x16xf32>
    %14 = vector.broadcast %13 : vector<1x8x16xf32> to vector<8x8x16xf32>
    %15 = arith.mulf %4, %14 : vector<8x8x16xf32>
    %cst_6 = arith.constant dense<0.000000e+00> : vector<8x16xf32>
    %16 = vector.multi_reduction <add>, %15, %cst_6 [1] : vector<8x8x16xf32> to vector<8x16xf32>
    %17 = arith.addf %16, %6 : vector<8x16xf32>
    %18 = math.tanh %17 : vector<8x16xf32>
    %19 = vector.shape_cast %18 : vector<8x16xf32> to vector<1x8x16xf32>
    %20 = vector.broadcast %19 : vector<1x8x16xf32> to vector<8x8x16xf32>
    %21 = arith.mulf %3, %20 : vector<8x8x16xf32>
    %cst_7 = arith.constant dense<0.000000e+00> : vector<8x16xf32>
    %22 = vector.multi_reduction <add>, %21, %cst_7 [1] : vector<8x8x16xf32> to vector<8x16xf32>
    %23 = vector.shape_cast %22 : vector<8x16xf32> to vector<8x1x16xf32>
    %24 = vector.broadcast %23 : vector<8x1x16xf32> to vector<8x32x16xf32>
    %25 = arith.mulf %2, %24 : vector<8x32x16xf32>
    %cst_8 = arith.constant dense<0.000000e+00> : vector<32x16xf32>
    %26 = vector.multi_reduction <add>, %25, %cst_8 [0] : vector<8x32x16xf32> to vector<32x16xf32>
    %27 = arith.addf %0, %26 : vector<32x16xf32>
    %c0_9 = arith.constant 0 : index
    %c0_10 = arith.constant 0 : index
    %28 = vector.load %arg4[%c0_9, %c0_10] : memref<32x16xf32, #tpu.memory_space<vmem>>, vector<32x16xf32>
    tpu.vector_store %arg4[%c0_9, %c0_10], %27 {strides = array<i32>} : memref<32x16xf32, #tpu.memory_space<vmem>>, vector<32x16xf32>,
    %29 = arith.mulf %18, %18 : vector<8x16xf32>
    %cst_11 = arith.constant 1.000000e+00 : f32
    %30 = vector.broadcast %cst_11 : f32 to vector<8x16xf32>
    %31 = arith.subf %30, %29 : vector<8x16xf32>
    %32 = arith.mulf %31, %7 : vector<8x16xf32>
    %33 = arith.mulf %32, %8 : vector<8x16xf32>
    %cst_12 = arith.constant 1.000000e+00 : f32
    %34 = vector.broadcast %cst_12 : f32 to vector<8x16xf32>
    %35 = arith.addf %34, %33 : vector<8x16xf32>
    %36 = math.absf %35 : vector<8x16xf32>
    %37 = math.log %36 : vector<8x16xf32>
    %cst_13 = arith.constant dense<0.000000e+00> : vector<16xf32>
    %38 = vector.multi_reduction <add>, %37, %cst_13 [0] : vector<8x16xf32> to vector<16xf32>
    %39 = vector.shape_cast %38 : vector<16xf32> to vector<1x16xf32>
    %c0_14 = arith.constant 0 : index
    %c0_15 = arith.constant 0 : index
    %40 = vector.load %arg5[%c0_14, %c0_15] : memref<1x16xf32, #tpu.memory_space<vmem>>, vector<1x16xf32>
    tpu.vector_store %arg5[%c0_14, %c0_15], %39 {strides = array<i32>} : memref<1x16xf32, #tpu.memory_space<vmem>>, vector<1x16xf32>,
    return
  }
  func.func @transform_0(%arg0: i32) -> (i32, i32) {
    %c0_i32 = arith.constant 0 : i32
    %c0_i32_0 = arith.constant 0 : i32
    return %c0_i32, %arg0 : i32, i32
  }
  func.func @transform_1(%arg0: i32) -> (i32, i32, i32) {
    %c0_i32 = arith.constant 0 : i32
    %c0_i32_0 = arith.constant 0 : i32
    %c0_i32_1 = arith.constant 0 : i32
    return %c0_i32, %c0_i32_0, %arg0 : i32, i32, i32
  }
  func.func @transform_2(%arg0: i32) -> (i32, i32) {
    %c0_i32 = arith.constant 0 : i32
    %c0_i32_0 = arith.constant 0 : i32
    return %c0_i32, %arg0 : i32, i32
  }
  func.func @transform_3(%arg0: i32) -> (i32, i32) {
    %c0_i32 = arith.constant 0 : i32
    %c0_i32_0 = arith.constant 0 : i32
    return %c0_i32, %arg0 : i32, i32
  }
  func.func @transform_4(%arg0: i32) -> (i32, i32) {
    %c0_i32 = arith.constant 0 : i32
    %c0_i32_0 = arith.constant 0 : i32
    return %c0_i32, %arg0 : i32, i32
  }
}

</mosaic_0001>

<llo_original>
// kernel: sylvester_forward.1
$region0: #{sylvester_forward.1}
  #allocation0 [shape = 'u32[]', space=smem, size = 0x4, offset = 0x4, fixed_abs, tag = 'smem constant byte address 0x4 - core index']
  #allocation1 [shape = 'u32[144,128]{1,0:T(1,128)}', space=vmem, size = 0x12000, scoped, tag = 'internal scratch']
  %s0 = inlined_call_operand.vmem [shape: f32[32,16], index: 0, kind: input, shape index: {}]
  %s1 = inlined_call_operand.vmem [shape: f32[8,48,16], index: 1, kind: input, shape index: {}]
  %s2 = inlined_call_operand.vmem [shape: f32[24,16], index: 2, kind: input, shape index: {}]
  %s3 = inlined_call_operand.vmem [shape: f32[32,16], index: 3, kind: output, shape index: {0}]
  %s4 = inlined_call_operand.hbm [shape: f32[1,16], index: 4, kind: output, shape index: {1}]
  %5 = xla_tuple %s3, %s4
  %s6 = sld [smem:[#allocation0]]
  $region30: #{sylvester_forward.1} parent=0
    _
  %s8 = ssub.s32 1, %s6
  %s9 = scalar_select 0, %s8, %s6
  $region1: #{sylvester_forward.1} parent=0
    #allocation2 [shape = 'u8[512]{0}', space=vmem, size = 0x400, scoped, tag = 'output window, operand 1, single buffered']
    #allocation3 [shape = 's32[1]{0}', space=sflag, size = 0x4, scoped, tag = 'scoped memory for sylvester_forward.1']
    %10 = vsyncpa [#allocation3], 0
    // Predicated region
    $region2: #{sylvester_forward.1} parent=1 // pred_check
      _
    $region3: #{sylvester_forward.1} parent=1 // pred_check_branch
      %12 = sbr.rel (0) target = $region5
    $region4: #{sylvester_forward.1} parent=1 // pred_region
      _
    $region5: #{sylvester_forward.1} parent=1 // pred_fallthru
      _
    // Predicated region
    $region6: #{sylvester_forward.1} parent=1 // pred_check
      _
    $region7: #{sylvester_forward.1} parent=1 // pred_check_branch
      %14 = sbr.rel (0) target = $region9
    $region8: #{sylvester_forward.1} parent=1 // pred_region
      _
    $region9: #{sylvester_forward.1} parent=1 // pred_fallthru
      _
    // Predicated region
    $region10: #{sylvester_forward.1} parent=1 // pred_check
      _
    $region11: #{sylvester_forward.1} parent=1 // pred_check_branch
      %16 = sbr.rel (0) target = $region13
    $region12: #{sylvester_forward.1} parent=1 // pred_region
      _
    $region13: #{sylvester_forward.1} parent=1 // pred_fallthru
      _
    %v17 = vld [vmem:[%s0] sm:$0xff]
    %v18 = vld [vmem:[%s0 + $0x8] sm:$0xff]
    %v19 = vld [vmem:[%s0 + $0x10] sm:$0xff]
    %v20 = vld [vmem:[%s0 + $0x18] sm:$0xff]
    %v21 = vld [vmem:[%s1] sm:$0xff]
    %v22 = vld [vmem:[%s1 + $0x8] sm:$0xff]
    %v23 = vld [vmem:[%s1 + $0x10] sm:$0xff]
    %v24 = vld [vmem:[%s1 + $0x18] sm:$0xff]
    %v25 = vld [vmem:[%s1 + $0x20] sm:$0xff]
    %v26 = vld [vmem:[%s1 + $0x28] sm:$0xff]
    %v27 = vld [vmem:[%s1 + $0x30] sm:$0xff]
    %v28 = vld [vmem:[%s1 + $0x38] sm:$0xff]
    %v29 = vld [vmem:[%s1 + $0x40] sm:$0xff]
    %v30 = vld [vmem:[%s1 + $0x48] sm:$0xff]
    %v31 = vld [vmem:[%s1 + $0x50] sm:$0xff]
    %v32 = vld [vmem:[%s1 + $0x58] sm:$0xff]
    %v33 = vld [vmem:[%s1 + $0x60] sm:$0xff]
    %v34 = vld [vmem:[%s1 + $0x68] sm:$0xff]
    %v35 = vld [vmem:[%s1 + $0x70] sm:$0xff]
    %v36 = vld [vmem:[%s1 + $0x78] sm:$0xff]
    %v37 = vld [vmem:[%s1 + $0x80] sm:$0xff]
    %v38 = vld [vmem:[%s1 + $0x88] sm:$0xff]
    %v39 = vld [vmem:[%s1 + $0x90] sm:$0xff]
    %v40 = vld [vmem:[%s1 + $0x98] sm:$0xff]
    %v41 = vld [vmem:[%s1 + $0xa0] sm:$0xff]
    %v42 = vld [vmem:[%s1 + $0xa8] sm:$0xff]
    %v43 = vld [vmem:[%s1 + $0xb0] sm:$0xff]
    %v44 = vld [vmem:[%s1 + $0xb8] sm:$0xff]
    %v45 = vld [vmem:[%s1 + $0xc0] sm:$0xff]
    %v46 = vld [vmem:[%s1 + $0xc8] sm:$0xff]
    %v47 = vld [vmem:[%s1 + $0xd0] sm:$0xff]
    %v48 = vld [vmem:[%s1 + $0xd8] sm:$0xff]
    %v49 = vld [vmem:[%s1 + $0xe0] sm:$0xff]
    %v50 = vld [vmem:[%s1 + $0xe8] sm:$0xff]
    %v51 = vld [vmem:[%s1 + $0xf0] sm:$0xff]
    %v52 = vld [vmem:[%s1 + $0xf8] sm:$0xff]
    %v53 = vld [vmem:[%s1 + $0x100] sm:$0xff]
    %v54 = vld [vmem:[%s1 + $0x108] sm:$0xff]
    %v55 = vld [vmem:[%s1 + $0x110] sm:$0xff]
    %v56 = vld [vmem:[%s1 + $0x118] sm:$0xff]
    %v57 = vld [vmem:[%s1 + $0x120] sm:$0xff]
    %v58 = vld [vmem:[%s1 + $0x128] sm:$0xff]
    %v59 = vld [vmem:[%s1 + $0x130] sm:$0xff]
    %v60 = vld [vmem:[%s1 + $0x138] sm:$0xff]
    %v61 = vld [vmem:[%s1 + $0x140] sm:$0xff]
    %v62 = vld [vmem:[%s1 + $0x148] sm:$0xff]
    %v63 = vld [vmem:[%s1 + $0x150] sm:$0xff]
    %v64 = vld [vmem:[%s1 + $0x158] sm:$0xff]
    %v65 = vld [vmem:[%s1 + $0x160] sm:$0xff]
    %v66 = vld [vmem:[%s1 + $0x168] sm:$0xff]
    %v67 = vld [vmem:[%s1 + $0x170] sm:$0xff]
    %v68 = vld [vmem:[%s1 + $0x178] sm:$0xff]
    %v69 = vld [vmem:[%s2] sm:$0xff]
    %v70 = vld [vmem:[%s2 + $0x8] sm:$0xff]
    %v71 = vld [vmem:[%s2 + $0x10] sm:$0xff]
    %v72 = vmul.f32 %v21, %v17
    %v73 = vmul.f32 %v22, %v18
    %v74 = vmul.f32 %v23, %v19
    %v75 = vmul.f32 %v24, %v20
    %v76 = vmul.f32 %v27, %v17
    %v77 = vmul.f32 %v28, %v18
    %v78 = vmul.f32 %v29, %v19
    %v79 = vmul.f32 %v30, %v20
    %v80 = vmul.f32 %v33, %v17
    %v81 = vmul.f32 %v34, %v18
    %v82 = vmul.f32 %v35, %v19
    %v83 = vmul.f32 %v36, %v20
    %v84 = vmul.f32 %v39, %v17
    %v85 = vmul.f32 %v40, %v18
    %v86 = vmul.f32 %v41, %v19
    %v87 = vmul.f32 %v42, %v20
    %v88 = vmul.f32 %v45, %v17
    %v89 = vmul.f32 %v46, %v18
    %v90 = vmul.f32 %v47, %v19
    %v91 = vmul.f32 %v48, %v20
    %v92 = vmul.f32 %v51, %v17
    %v93 = vmul.f32 %v52, %v18
    %v94 = vmul.f32 %v53, %v19
    %v95 = vmul.f32 %v54, %v20
    %v96 = vmul.f32 %v57, %v17
    %v97 = vmul.f32 %v58, %v18
    %v98 = vmul.f32 %v59, %v19
    %v99 = vmul.f32 %v60, %v20
    %v100 = vmul.f32 %v63, %v17
    %v101 = vmul.f32 %v64, %v18
    %v102 = vmul.f32 %v65, %v19
    %v103 = vmul.f32 %v66, %v20
    %vm104 = vcmask 130048
    %v105 = vsel %vm104, %v72, 0.0
    %v106 = vsel %vm104, %v73, 0.0
    %v107 = vadd.f32 %v105, %v106
    %v108 = vsel %vm104, %v74, 0.0
    %v109 = vadd.f32 %v107, %v108
    %v110 = vsel %vm104, %v75, 0.0
    %v111 = vadd.f32 %v109, %v110
    %v112 = vrot.slane %v111, 4
    %v113 = vadd.f32 %v111, %v112
    %v114 = vrot.slane %v113, 2
    %v115 = vadd.f32 %v113, %v114
    %v116 = vrot.slane %v115, 1
    %v117 = vadd.f32 %v115, %v116
    %v118 = vsel %vm104, %v76, 0.0
    %v119 = vsel %vm104, %v77, 0.0
    %v120 = vadd.f32 %v118, %v119
    %v121 = vsel %vm104, %v78, 0.0
    %v122 = vadd.f32 %v120, %v121
    %v123 = vsel %vm104, %v79, 0.0
    %v124 = vadd.f32 %v122, %v123
    %v125 = vrot.slane %v124, 4
    %v126 = vadd.f32 %v124, %v125
    %v127 = vrot.slane %v126, 2
    %v128 = vadd.f32 %v126, %v127
    %v129 = vrot.slane %v128, 1
    %v130 = vadd.f32 %v128, %v129
    %v131 = vsel %vm104, %v80, 0.0
    %v132 = vsel %vm104, %v81, 0.0
    %v133 = vadd.f32 %v131, %v132
    %v134 = vsel %vm104, %v82, 0.0
    %v135 = vadd.f32 %v133, %v134
    %v136 = vsel %vm104, %v83, 0.0
    %v137 = vadd.f32 %v135, %v136
    %v138 = vrot.slane %v137, 4
    %v139 = vadd.f32 %v137, %v138
    %v140 = vrot.slane %v139, 2
    %v141 = vadd.f32 %v139, %v140
    %v142 = vrot.slane %v141, 1
    %v143 = vadd.f32 %v141, %v142
    %v144 = vsel %vm104, %v84, 0.0
    %v145 = vsel %vm104, %v85, 0.0
    %v146 = vadd.f32 %v144, %v145
    %v147 = vsel %vm104, %v86, 0.0
    %v148 = vadd.f32 %v146, %v147
    %v149 = vsel %vm104, %v87, 0.0
    %v150 = vadd.f32 %v148, %v149
    %v151 = vrot.slane %v150, 4
    %v152 = vadd.f32 %v150, %v151
    %v153 = vrot.slane %v152, 2
    %v154 = vadd.f32 %v152, %v153
    %v155 = vrot.slane %v154, 1
    %v156 = vadd.f32 %v154, %v155
    %v157 = vsel %vm104, %v88, 0.0
    %v158 = vsel %vm104, %v89, 0.0
    %v159 = vadd.f32 %v157, %v158
    %v160 = vsel %vm104, %v90, 0.0
    %v161 = vadd.f32 %v159, %v160
    %v162 = vsel %vm104, %v91, 0.0
    %v163 = vadd.f32 %v161, %v162
    %v164 = vrot.slane %v163, 4
    %v165 = vadd.f32 %v163, %v164
    %v166 = vrot.slane %v165, 2
    %v167 = vadd.f32 %v165, %v166
    %v168 = vrot.slane %v167, 1
    %v169 = vadd.f32 %v167, %v168
    %v170 = vsel %vm104, %v92, 0.0
    %v171 = vsel %vm104, %v93, 0.0
    %v172 = vadd.f32 %v170, %v171
    %v173 = vsel %vm104, %v94, 0.0
    %v174 = vadd.f32 %v172, %v173
    %v175 = vsel %vm104, %v95, 0.0
    %v176 = vadd.f32 %v174, %v175
    %v177 = vrot.slane %v176, 4
    %v178 = vadd.f32 %v176, %v177
    %v179 = vrot.slane %v178, 2
    %v180 = vadd.f32 %v178, %v179
    %v181 = vrot.slane %v180, 1
    %v182 = vadd.f32 %v180, %v181
    %v183 = vsel %vm104, %v96, 0.0
    %v184 = vsel %vm104, %v97, 0.0
    %v185 = vadd.f32 %v183, %v184
    %v186 = vsel %vm104, %v98, 0.0
    %v187 = vadd.f32 %v185, %v186
    %v188 = vsel %vm104, %v99, 0.0
    %v189 = vadd.f32 %v187, %v188
    %v190 = vrot.slane %v189, 4
    %v191 = vadd.f32 %v189, %v190
    %v192 = vrot.slane %v191, 2
    %v193 = vadd.f32 %v191, %v192
    %v194 = vrot.slane %v193, 1
    %v195 = vadd.f32 %v193, %v194
    %v196 = vsel %vm104, %v100, 0.0
    %v197 = vsel %vm104, %v101, 0.0
    %v198 = vadd.f32 %v196, %v197
    %v199 = vsel %vm104, %v102, 0.0
    %v200 = vadd.f32 %v198, %v199
    %v201 = vsel %vm104, %v103, 0.0
    %v202 = vadd.f32 %v200, %v201
    %v203 = vrot.slane %v202, 4
    %v204 = vadd.f32 %v202, %v203
    %v205 = vrot.slane %v204, 2
    %v206 = vadd.f32 %v204, %v205
    %v207 = vrot.slane %v206, 1
    %v208 = vadd.f32 %v206, %v207
    %vm217 = vcmask 1041409
    %v218 = vsel %vm217, %v130, %v117
    %vm219 = vcmask 1042434
    %v220 = vsel %vm219, %v143, %v218
    %vm221 = vcmask 1043459
    %v222 = vsel %vm221, %v156, %v220
    %vm223 = vcmask 1044484
    %v224 = vsel %vm223, %v169, %v222
    %vm225 = vcmask 1045509
    %v226 = vsel %vm225, %v182, %v224
    %vm227 = vcmask 1046534
    %v228 = vsel %vm227, %v195, %v226
    %vm229 = vcmask 1047559
    %v230 = vsel %vm229, %v208, %v228
    %v232 = vmul.f32 %v26, %v230
    %v233 = vmul.f32 %v32, %v230
    %v234 = vmul.f32 %v38, %v230
    %v235 = vmul.f32 %v44, %v230
    %v236 = vmul.f32 %v50, %v230
    %v237 = vmul.f32 %v56, %v230
    %v238 = vmul.f32 %v62, %v230
    %v239 = vmul.f32 %v68, %v230
    %v240 = vsel %vm104, %v232, 0.0
    %v241 = vrot.slane %v240, 4
    %v242 = vadd.f32 %v240, %v241
    %v243 = vrot.slane %v242, 2
    %v244 = vadd.f32 %v242, %v243
    %v245 = vrot.slane %v244, 1
    %v246 = vadd.f32 %v244, %v245
    %v247 = vsel %vm104, %v233, 0.0
    %v248 = vrot.slane %v247, 4
    %v249 = vadd.f32 %v247, %v248
    %v250 = vrot.slane %v249, 2
    %v251 = vadd.f32 %v249, %v250
    %v252 = vrot.slane %v251, 1
    %v253 = vadd.f32 %v251, %v252
    %v254 = vsel %vm104, %v234, 0.0
    %v255 = vrot.slane %v254, 4
    %v256 = vadd.f32 %v254, %v255
    %v257 = vrot.slane %v256, 2
    %v258 = vadd.f32 %v256, %v257
    %v259 = vrot.slane %v258, 1
    %v260 = vadd.f32 %v258, %v259
    %v261 = vsel %vm104, %v235, 0.0
    %v262 = vrot.slane %v261, 4
    %v263 = vadd.f32 %v261, %v262
    %v264 = vrot.slane %v263, 2
    %v265 = vadd.f32 %v263, %v264
    %v266 = vrot.slane %v265, 1
    %v267 = vadd.f32 %v265, %v266
    %v268 = vsel %vm104, %v236, 0.0
    %v269 = vrot.slane %v268, 4
    %v270 = vadd.f32 %v268, %v269
    %v271 = vrot.slane %v270, 2
    %v272 = vadd.f32 %v270, %v271
    %v273 = vrot.slane %v272, 1
    %v274 = vadd.f32 %v272, %v273
    %v275 = vsel %vm104, %v237, 0.0
    %v276 = vrot.slane %v275, 4
    %v277 = vadd.f32 %v275, %v276
    %v278 = vrot.slane %v277, 2
    %v279 = vadd.f32 %v277, %v278
    %v280 = vrot.slane %v279, 1
    %v281 = vadd.f32 %v279, %v280
    %v282 = vsel %vm104, %v238, 0.0
    %v283 = vrot.slane %v282, 4
    %v284 = vadd.f32 %v282, %v283
    %v285 = vrot.slane %v284, 2
    %v286 = vadd.f32 %v284, %v285
    %v287 = vrot.slane %v286, 1
    %v288 = vadd.f32 %v286, %v287
    %v289 = vsel %vm104, %v239, 0.0
    %v290 = vrot.slane %v289, 4
    %v291 = vadd.f32 %v289, %v290
    %v292 = vrot.slane %v291, 2
    %v293 = vadd.f32 %v291, %v292
    %v294 = vrot.slane %v293, 1
    %v295 = vadd.f32 %v293, %v294
    %v297 = vrot.slane %v69, 1
    %v298 = vrot.slane %v69, 2
    %v299 = vrot.slane %v69, 3
    %v300 = vrot.slane %v69, 4
    %v301 = vrot.slane %v69, 5
    %v302 = vrot.slane %v69, 6
    %v303 = vrot.slane %v69, 7
    %v312 = vadd.f32 %v246, %v69
    %v313 = vadd.f32 %v253, %v297
    %v314 = vadd.f32 %v260, %v298
    %v315 = vadd.f32 %v267, %v299
    %v316 = vadd.f32 %v274, %v300
    %v317 = vadd.f32 %v281, %v301
    %v318 = vadd.f32 %v288, %v302
    %v319 = vadd.f32 %v295, %v303
    %v320 = vtanh.pop %v312
    %v321 = vtanh.pop %v313
    %v322 = vtanh.pop %v314
    %v323 = vtanh.pop %v315
    %v324 = vtanh.pop %v316
    %v325 = vtanh.pop %v317
    %v326 = vtanh.pop %v318
    %v327 = vtanh.pop %v319
    %v336 = vrot.slane %v321, 7
    %v337 = vsel %vm217, %v336, %v320
    %v338 = vrot.slane %v322, 6
    %v339 = vsel %vm219, %v338, %v337
    %v340 = vrot.slane %v323, 5
    %v341 = vsel %vm221, %v340, %v339
    %v342 = vrot.slane %v324, 4
    %v343 = vsel %vm223, %v342, %v341
    %v344 = vrot.slane %v325, 3
    %v345 = vsel %vm225, %v344, %v343
    %v346 = vrot.slane %v326, 2
    %v347 = vsel %vm227, %v346, %v345
    %v348 = vrot.slane %v327, 1
    %v349 = vsel %vm229, %v348, %v347
    %v351 = vmul.f32 %v25, %v349
    %v352 = vmul.f32 %v31, %v349
    %v353 = vmul.f32 %v37, %v349
    %v354 = vmul.f32 %v43, %v349
    %v355 = vmul.f32 %v49, %v349
    %v356 = vmul.f32 %v55, %v349
    %v357 = vmul.f32 %v61, %v349
    %v358 = vmul.f32 %v67, %v349
    %v359 = vsel %vm104, %v351, 0.0
    %v360 = vrot.slane %v359, 4
    %v361 = vadd.f32 %v359, %v360
    %v362 = vrot.slane %v361, 2
    %v363 = vadd.f32 %v361, %v362
    %v364 = vrot.slane %v363, 1
    %v365 = vadd.f32 %v363, %v364
    %v366 = vsel %vm104, %v352, 0.0
    %v367 = vrot.slane %v366, 4
    %v368 = vadd.f32 %v366, %v367
    %v369 = vrot.slane %v368, 2
    %v370 = vadd.f32 %v368, %v369
    %v371 = vrot.slane %v370, 1
    %v372 = vadd.f32 %v370, %v371
    %v373 = vsel %vm104, %v353, 0.0
    %v374 = vrot.slane %v373, 4
    %v375 = vadd.f32 %v373, %v374
    %v376 = vrot.slane %v375, 2
    %v377 = vadd.f32 %v375, %v376
    %v378 = vrot.slane %v377, 1
    %v379 = vadd.f32 %v377, %v378
    %v380 = vsel %vm104, %v354, 0.0
    %v381 = vrot.slane %v380, 4
    %v382 = vadd.f32 %v380, %v381
    %v383 = vrot.slane %v382, 2
    %v384 = vadd.f32 %v382, %v383
    %v385 = vrot.slane %v384, 1
    %v386 = vadd.f32 %v384, %v385
    %v387 = vsel %vm104, %v355, 0.0
    %v388 = vrot.slane %v387, 4
    %v389 = vadd.f32 %v387, %v388
    %v390 = vrot.slane %v389, 2
    %v391 = vadd.f32 %v389, %v390
    %v392 = vrot.slane %v391, 1
    %v393 = vadd.f32 %v391, %v392
    %v394 = vsel %vm104, %v356, 0.0
    %v395 = vrot.slane %v394, 4
    %v396 = vadd.f32 %v394, %v395
    %v397 = vrot.slane %v396, 2
    %v398 = vadd.f32 %v396, %v397
    %v399 = vrot.slane %v398, 1
    %v400 = vadd.f32 %v398, %v399
    %v401 = vsel %vm104, %v357, 0.0
    %v402 = vrot.slane %v401, 4
    %v403 = vadd.f32 %v401, %v402
    %v404 = vrot.slane %v403, 2
    %v405 = vadd.f32 %v403, %v404
    %v406 = vrot.slane %v405, 1
    %v407 = vadd.f32 %v405, %v406
    %v408 = vsel %vm104, %v358, 0.0
    %v409 = vrot.slane %v408, 4
    %v410 = vadd.f32 %v408, %v409
    %v411 = vrot.slane %v410, 2
    %v412 = vadd.f32 %v410, %v411
    %v413 = vrot.slane %v412, 1
    %v414 = vadd.f32 %v412, %v413
    %v415 = vmul.f32 %v21, %v365
    %v416 = vmul.f32 %v22, %v365
    %v417 = vmul.f32 %v23, %v365
    %v418 = vmul.f32 %v24, %v365
    %v419 = vmul.f32 %v27, %v372
    %v420 = vmul.f32 %v28, %v372
    %v421 = vmul.f32 %v29, %v372
    %v422 = vmul.f32 %v30, %v372
    %v423 = vmul.f32 %v33, %v379
    %v424 = vmul.f32 %v34, %v379
    %v425 = vmul.f32 %v35, %v379
    %v426 = vmul.f32 %v36, %v379
    %v427 = vmul.f32 %v39, %v386
    %v428 = vmul.f32 %v40, %v386
    %v429 = vmul.f32 %v41, %v386
    %v430 = vmul.f32 %v42, %v386
    %v431 = vmul.f32 %v45, %v393
    %v432 = vmul.f32 %v46, %v393
    %v433 = vmul.f32 %v47, %v393
    %v434 = vmul.f32 %v48, %v393
    %v435 = vmul.f32 %v51, %v400
    %v436 = vmul.f32 %v52, %v400
    %v437 = vmul.f32 %v53, %v400
    %v438 = vmul.f32 %v54, %v400
    %v439 = vmul.f32 %v57, %v407
    %v440 = vmul.f32 %v58, %v407
    %v441 = vmul.f32 %v59, %v407
    %v442 = vmul.f32 %v60, %v407
    %v443 = vmul.f32 %v63, %v414
    %v444 = vmul.f32 %v64, %v414
    %v445 = vmul.f32 %v65, %v414
    %v446 = vmul.f32 %v66, %v414
    %v447 = vsel %vm104, %v415, 0.0
    %v448 = vsel %vm104, %v419, 0.0
    %v449 = vadd.f32 %v447, %v448
    %v450 = vsel %vm104, %v423, 0.0
    %v451 = vadd.f32 %v449, %v450
    %v452 = vsel %vm104, %v427, 0.0
    %v453 = vadd.f32 %v451, %v452
    %v454 = vsel %vm104, %v431, 0.0
    %v455 = vadd.f32 %v453, %v454
    %v456 = vsel %vm104, %v435, 0.0
    %v457 = vadd.f32 %v455, %v456
    %v458 = vsel %vm104, %v439, 0.0
    %v459 = vadd.f32 %v457, %v458
    %v460 = vsel %vm104, %v443, 0.0
    %v461 = vadd.f32 %v459, %v460
    %v462 = vsel %vm104, %v416, 0.0
    %v463 = vsel %vm104, %v420, 0.0
    %v464 = vadd.f32 %v462, %v463
    %v465 = vsel %vm104, %v424, 0.0
    %v466 = vadd.f32 %v464, %v465
    %v467 = vsel %vm104, %v428, 0.0
    %v468 = vadd.f32 %v466, %v467
    %v469 = vsel %vm104, %v432, 0.0
    %v470 = vadd.f32 %v468, %v469
    %v471 = vsel %vm104, %v436, 0.0
    %v472 = vadd.f32 %v470, %v471
    %v473 = vsel %vm104, %v440, 0.0
    %v474 = vadd.f32 %v472, %v473
    %v475 = vsel %vm104, %v444, 0.0
    %v476 = vadd.f32 %v474, %v475
    %v477 = vsel %vm104, %v417, 0.0
    %v478 = vsel %vm104, %v421, 0.0
    %v479 = vadd.f32 %v477, %v478
    %v480 = vsel %vm104, %v425, 0.0
    %v481 = vadd.f32 %v479, %v480
    %v482 = vsel %vm104, %v429, 0.0
    %v483 = vadd.f32 %v481, %v482
    %v484 = vsel %vm104, %v433, 0.0
    %v485 = vadd.f32 %v483, %v484
    %v486 = vsel %vm104, %v437, 0.0
    %v487 = vadd.f32 %v485, %v486
    %v488 = vsel %vm104, %v441, 0.0
    %v489 = vadd.f32 %v487, %v488
    %v490 = vsel %vm104, %v445, 0.0
    %v491 = vadd.f32 %v489, %v490
    %v492 = vsel %vm104, %v418, 0.0
    %v493 = vsel %vm104, %v422, 0.0
    %v494 = vadd.f32 %v492, %v493
    %v495 = vsel %vm104, %v426, 0.0
    %v496 = vadd.f32 %v494, %v495
    %v497 = vsel %vm104, %v430, 0.0
    %v498 = vadd.f32 %v496, %v497
    %v499 = vsel %vm104, %v434, 0.0
    %v500 = vadd.f32 %v498, %v499
    %v501 = vsel %vm104, %v438, 0.0
    %v502 = vadd.f32 %v500, %v501
    %v503 = vsel %vm104, %v442, 0.0
    %v504 = vadd.f32 %v502, %v503
    %v505 = vsel %vm104, %v446, 0.0
    %v506 = vadd.f32 %v504, %v505
    %v507 = vadd.f32 %v17, %v461
    %v508 = vadd.f32 %v18, %v476
    %v509 = vadd.f32 %v19, %v491
    %v510 = vadd.f32 %v20, %v506
    %511 = vst.msk [vmem:[%s3] sm:$0xff] %vm104, %v507
    %512 = vst.msk [vmem:[%s3 + $0x8] sm:$0xff] %vm104, %v508
    %513 = vst.msk [vmem:[%s3 + $0x10] sm:$0xff] %vm104, %v509
    %514 = vst.msk [vmem:[%s3 + $0x18] sm:$0xff] %vm104, %v510
    %v515 = vmul.f32 %v320, %v320
    %v516 = vmul.f32 %v321, %v321
    %v517 = vmul.f32 %v322, %v322
    %v518 = vmul.f32 %v323, %v323
    %v519 = vmul.f32 %v324, %v324
    %v520 = vmul.f32 %v325, %v325
    %v521 = vmul.f32 %v326, %v326
    %v522 = vmul.f32 %v327, %v327
    %v523 = vsub.f32 1.0, %v515
    %v524 = vsub.f32 1.0, %v516
    %v525 = vsub.f32 1.0, %v517
    %v526 = vsub.f32 1.0, %v518
    %v527 = vsub.f32 1.0, %v519
    %v528 = vsub.f32 1.0, %v520
    %v529 = vsub.f32 1.0, %v521
    %v530 = vsub.f32 1.0, %v522
    %v532 = vrot.slane %v70, 1
    %v533 = vrot.slane %v70, 2
    %v534 = vrot.slane %v70, 3
    %v535 = vrot.slane %v70, 4
    %v536 = vrot.slane %v70, 5
    %v537 = vrot.slane %v70, 6
    %v538 = vrot.slane %v70, 7
    %v547 = vmul.f32 %v523, %v70
    %v548 = vmul.f32 %v524, %v532
    %v549 = vmul.f32 %v525, %v533
    %v550 = vmul.f32 %v526, %v534
    %v551 = vmul.f32 %v527, %v535
    %v552 = vmul.f32 %v528, %v536
    %v553 = vmul.f32 %v529, %v537
    %v554 = vmul.f32 %v530, %v538
    %v556 = vrot.slane %v71, 1
    %v557 = vrot.slane %v71, 2
    %v558 = vrot.slane %v71, 3
    %v559 = vrot.slane %v71, 4
    %v560 = vrot.slane %v71, 5
    %v561 = vrot.slane %v71, 6
    %v562 = vrot.slane %v71, 7
    %v571 = vmul.f32 %v547, %v71
    %v572 = vmul.f32 %v548, %v556
    %v573 = vmul.f32 %v549, %v557
    %v574 = vmul.f32 %v550, %v558
    %v575 = vmul.f32 %v551, %v559
    %v576 = vmul.f32 %v552, %v560
    %v577 = vmul.f32 %v553, %v561
    %v578 = vmul.f32 %v554, %v562
    %v579 = vadd.f32 %v571, 1.0
    %v580 = vadd.f32 %v572, 1.0
    %v581 = vadd.f32 %v573, 1.0
    %v582 = vadd.f32 %v574, 1.0
    %v583 = vadd.f32 %v575, 1.0
    %v584 = vadd.f32 %v576, 1.0
    %v585 = vadd.f32 %v577, 1.0
    %v586 = vadd.f32 %v578, 1.0
    %v587 = vand.u32 2147483647, %v579
    %v588 = vand.u32 2147483647, %v580
    %v589 = vand.u32 2147483647, %v581
    %v590 = vand.u32 2147483647, %v582
    %v591 = vand.u32 2147483647, %v583
    %v592 = vand.u32 2147483647, %v584
    %v593 = vand.u32 2147483647, %v585
    %v594 = vand.u32 2147483647, %v586
    %v595 = vlog2.pop %v587
    %v596 = vmul.f32 %v595, 0.6931472
    %v597 = vlog2.pop %v588
    %v598 = vmul.f32 %v597, 0.6931472
    %v599 = vlog2.pop %v589
    %v600 = vmul.f32 %v599, 0.6931472
    %v601 = vlog2.pop %v590
    %v602 = vmul.f32 %v601, 0.6931472
    %v603 = vlog2.pop %v591
    %v604 = vmul.f32 %v603, 0.6931472
    %v605 = vlog2.pop %v592
    %v606 = vmul.f32 %v605, 0.6931472
    %v607 = vlog2.pop %v593
    %v608 = vmul.f32 %v607, 0.6931472
    %v609 = vlog2.pop %v594
    %v610 = vmul.f32 %v609, 0.6931472
    %v619 = vrot.slane %v598, 7
    %v620 = vsel %vm217, %v619, %v596
    %v621 = vrot.slane %v600, 6
    %v622 = vsel %vm219, %v621, %v620
    %v623 = vrot.slane %v602, 5
    %v624 = vsel %vm221, %v623, %v622
    %v625 = vrot.slane %v604, 4
    %v626 = vsel %vm223, %v625, %v624
    %v627 = vrot.slane %v606, 3
    %v628 = vsel %vm225, %v627, %v626
    %v629 = vrot.slane %v608, 2
    %v630 = vsel %vm227, %v629, %v628
    %v631 = vrot.slane %v610, 1
    %v632 = vsel %vm229, %v631, %v630
    %v634 = vsel %vm104, %v632, 0.0
    %v635 = vrot.slane %v634, 4
    %v636 = vadd.f32 %v634, %v635
    %v637 = vrot.slane %v636, 2
    %v638 = vadd.f32 %v636, %v637
    %v639 = vrot.slane %v638, 1
    %v640 = vadd.f32 %v638, %v639
    %vm641 = vcmask 122880
    %642 = vst.msk [vmem:[#allocation2] sm:$0x1] %vm641, %v640
    // Predicated region
    $region14: #{sylvester_forward.1} parent=1 // pred_check
      _
    $region15: #{sylvester_forward.1} parent=1 // pred_check_branch
      %644 = sbr.rel (0) target = $region17
    $region16: #{sylvester_forward.1} parent=1 // pred_region
      _
    $region17: #{sylvester_forward.1} parent=1 // pred_fallthru
      _
    // Predicated region
    $region18: #{sylvester_forward.1} parent=1 // pred_check
      _
    $region19: #{sylvester_forward.1} parent=1 // pred_check_branch
      %646 = sbr.rel (0) target = $region21
    $region20: #{sylvester_forward.1} parent=1 // pred_region
      %s648 = ssub.s32 16, 16
      %649 = vsyncadd [#allocation3], %s648
      %s651 = sshll.u32 [#allocation2], 4
      %s652 = int_to_ptr.vmem [resolvable:$true] %s651
      %654 = dma.vmem_to_hbm [thread:$0]  %s652, 16, %s4, [#allocation3]
    $region21: #{sylvester_forward.1} parent=1 // pred_fallthru
      _
    // Predicated region
    $region22: #{sylvester_forward.1} parent=1 // pred_check
      _
    $region23: #{sylvester_forward.1} parent=1 // pred_check_branch
      %656 = sbr.rel (0) target = $region25
    $region24: #{sylvester_forward.1} parent=1 // pred_region
      _
    $region25: #{sylvester_forward.1} parent=1 // pred_fallthru
      _
    // Predicated region
    $region26: #{sylvester_forward.1} parent=1 // pred_check
      _
    $region27: #{sylvester_forward.1} parent=1 // pred_check_branch
      %658 = sbr.rel (0) target = $region29
    $region28: #{sylvester_forward.1} parent=1 // pred_region
      %659 = dma.done [#allocation3], 16
    $region29: #{sylvester_forward.1} parent=1 // pred_fallthru
      _
    %660 = vsyncpa [#allocation3], 1

</llo_original>
